<compile_context>
chip_gen: v7x
topology: tpu7x:2x2x1
jax: 0.10.0
libtpu: 0.0.40
codegen_flags: <defaults>
</compile_context>

<pallas_src>
import jax
import jax.numpy as jnp
from jax import lax
from jax.experimental import pallas as pl
from jax.experimental.pallas import tpu as pltpu

# ---------------- synthetic, small configuration ----------------
B = 2                  # batch
L = 18                 # ESM token length (incl. BOS/EOS)
D = 32                 # esm2 embed_dim  (CNN in_channels)
S = L - 2              # features[:, 1:-1, :]  -> 16 tokens
KS = (3, 5)            # configs.projector.kernel_sizes (odd -> unambiguous 'same')
C = 8                  # configs.projector.out_channels
NK = len(KS)
CM = C * NK            # concatenated channels = 16
OUT_DIM = 4            # configs.projector.output_dim
NT = 2                 # configs.encoder.prompt.num_tasks
KMAX = max(KS)         # 5-tap unified conv window
HALF = (KMAX - 1) // 2 # 2
EPS = 1e-5

# row-slab layout: each batch occupies RPB rows; its S tokens sit at offset DOF.
DOF = 4                # >= HALF so every valid conv window stays inside the block
RPB = 24               # multiple of 8, >= DOF + S + HALF
R = B * RPB            # 48 total slab rows
HEAD = NT * OUT_DIM    # 8

# packed-weight slab row offsets
W2_OFF = KMAX * D                 # 160
WH_OFF = W2_OFF + KMAX * CM       # 240
WT_OFF = WH_OFF + CM              # 256
WALL_ROWS = WT_OFF + CM           # 272
BALL_ROWS = 8

FLOPS = 2 * R * (KMAX * D * CM + KMAX * CM * CM + CM * CM + CM * CM)
BYTES = 4 * (R * KMAX * D + WALL_ROWS * CM + BALL_ROWS * CM + R * CM)


# ---------------- Pallas kernel ----------------
def encoder_ssptm_kernel(u1_ref, wall_ref, ball_ref, out_ref):
    # validity mask over slab rows: 1.0 on real token rows, 0.0 on zero-pad rows.
    row = lax.broadcasted_iota(jnp.int32, (R, 1), 0)
    valid = row < 0                                    # all-False start
    for b in range(B):
        lo = b * RPB + DOF
        valid = jnp.logical_or(valid, jnp.logical_and(row >= lo, row < lo + S))
    mask = valid.astype(jnp.float32)                   # (R, 1)

    # ---- MultiScaleCNN stage 1: both Conv1d('same') branches as ONE im2col matmul ----
    # (BN1 folded into packed weight/bias; Dropout is identity in eval mode)
    h1 = jnp.dot(u1_ref[...], wall_ref[0:W2_OFF, :],
                 preferred_element_type=jnp.float32)           # (R, CM), contraction 160
    h1 = jnp.maximum(h1 + ball_ref[0:1, :], 0.0) * mask        # mask => exact 'same' zero pad

    # ---- stage 2: per-tap accumulation over the unified 5-tap window ----
    # row shifts via XLU sublane rolls (wrap only touches masked-zero pad rows)
    h2 = None
    for t in range(KMAX):
        sh = (HALF - t) % R
        piece = h1 if sh == 0 else pltpu.roll(h1, shift=sh, axis=0)
        d = jnp.dot(piece, wall_ref[W2_OFF + t * CM:W2_OFF + (t + 1) * CM, :],
                    preferred_element_type=jnp.float32)
        h2 = d if h2 is None else h2 + d
    h2 = jnp.maximum(h2 + ball_ref[1:2, :], 0.0)       # pad rows never read again

    # ---- MoBYMLP_multihead: Linear -> BN(folded) -> ReLU -> fused task heads ----
    z = jnp.dot(h2, wall_ref[WH_OFF:WT_OFF, :], preferred_element_type=jnp.float32)
    z = jnp.maximum(z + ball_ref[2:3, :], 0.0)
    out_ref[...] = (jnp.dot(z, wall_ref[WT_OFF:WALL_ROWS, :],
                            preferred_element_type=jnp.float32) + ball_ref[3:4, :])


# ---------------- parameter init (deterministic, PyTorch-shaped) ----------------
def init_params(key):
    keys = iter(jax.random.split(key, 32))

    def nrm(shape, scale=0.1):
        return scale * jax.random.normal(next(keys), shape, jnp.float32)

    def bn(n):
        gamma = 1.0 + nrm((n,))
        beta = nrm((n,))
        mean = nrm((n,))
        var = 1.0 + 0.5 * jax.random.uniform(next(keys), (n,), jnp.float32)
        scale = gamma / jnp.sqrt(var + EPS)
        shift = beta - mean * scale
        return scale, shift

    p = {}
    p['w1'] = [nrm((C, D, KS[i])) for i in range(NK)]      # Conv1d weight (Cout, Cin, k)
    p['b1'] = [nrm((C,)) for _ in range(NK)]
    p['w2'] = [nrm((C, CM, KS[i])) for i in range(NK)]
    p['b2'] = [nrm((C,)) for _ in range(NK)]
    p['bn1_scale'], p['bn1_shift'] = bn(CM)
    p['bn2_scale'], p['bn2_shift'] = bn(CM)
    p['wh'] = nrm((CM, CM))                                 # nn.Linear weight (out, in)
    p['bh'] = nrm((CM,))
    p['bnh_scale'], p['bnh_shift'] = bn(CM)
    p['head_w'] = [nrm((OUT_DIM, CM)) for _ in range(NT)]
    p['head_b'] = [nrm((OUT_DIM,)) for _ in range(NT)]
    return p


def to_kernel_args(p):
    """Pack all weights into one (272,16) slab and all biases into one (8,16) slab,
    with eval-mode BatchNorm folded in."""
    s1, t1 = p['bn1_scale'], p['bn1_shift']
    s2, t2 = p['bn2_scale'], p['bn2_shift']
    sh, th = p['bnh_scale'], p['bnh_shift']

    # stage-1 packed im2col weight (KMAX*D, CM): k=3 branch zero-padded to 5 taps
    w1p = jnp.zeros((KMAX * D, CM), jnp.float32)
    for i in range(NK):
        k = KS[i]
        off = (KMAX - k) // 2
        w = p['w1'][i]                                       # (C, D, k)
        for j in range(k):
            w1p = w1p.at[(off + j) * D:(off + j + 1) * D,
                         i * C:(i + 1) * C].set(w[:, :, j].T)
    b1 = jnp.concatenate([p['b1'][i] for i in range(NK)])
    w1p = w1p * s1[None, :]
    b1f = (b1 * s1 + t1).reshape(1, CM)

    # stage-2 packed weight (KMAX*CM, CM), same tap layout, BN2 folded
    w2p = jnp.zeros((KMAX * CM, CM), jnp.float32)
    for i in range(NK):
        k = KS[i]
        off = (KMAX - k) // 2
        w = p['w2'][i]                                       # (C, CM, k)
        for j in range(k):
            w2p = w2p.at[(off + j) * CM:(off + j + 1) * CM,
                         i * C:(i + 1) * C].set(w[:, :, j].T)
    b2 = jnp.concatenate([p['b2'][i] for i in range(NK)])
    w2p = w2p * s2[None, :]
    b2f = (b2 * s2 + t2).reshape(1, CM)

    # MoBY hidden Linear + BN fold
    whp = p['wh'].T * sh[None, :]                            # (CM, CM)
    bhf = (p['bh'] * sh + th).reshape(1, CM)

    # fused task heads, lane-padded to CM columns
    wt = jnp.concatenate([p['head_w'][i].T for i in range(NT)], axis=1)   # (CM, HEAD)
    wtp = jnp.zeros((CM, CM), jnp.float32).at[:, :HEAD].set(wt)
    bt = jnp.concatenate([p['head_b'][i] for i in range(NT)]).reshape(1, HEAD)
    btp = jnp.zeros((1, CM), jnp.float32).at[:, :HEAD].set(bt)

    wall = jnp.concatenate([w1p, w2p, whp, wtp], axis=0)     # (272, 16)
    ball = jnp.concatenate([b1f, b2f, bhf, btp,
                            jnp.zeros((BALL_ROWS - 4, CM), jnp.float32)], axis=0)  # (8, 16)
    return wall, ball


# ---------------- wrapper ----------------
def encoder_ssptm_forward(features, params):
    """features: (B, L, D) ESM2 representations. Returns list of NT arrays (B, S, OUT_DIM)."""
    x = features[:, 1:-1, :]                                 # if_pass_to_MHA == False branch
    # zero-padded per-batch row slab: batch b's tokens at rows [b*RPB+DOF, b*RPB+DOF+S)
    slab = jnp.pad(x, ((0, 0), (DOF, RPB - DOF - S), (0, 0))).reshape(B * RPB, D)
    # stage-1 im2col unfold (layout plumbing, done once in the wrapper)
    slab_ext = jnp.pad(slab, ((HALF, HALF), (0, 0)))         # (R+4, D)
    u1 = jnp.concatenate([slab_ext[t:t + R, :] for t in range(KMAX)], axis=1)  # (R, KMAX*D)

    wall, ball = to_kernel_args(params)

    y = pl.pallas_call(
        encoder_ssptm_kernel,
        out_shape=jax.ShapeDtypeStruct((R, CM), jnp.float32),
        grid_spec=pltpu.PrefetchScalarGridSpec(
            num_scalar_prefetch=0,
            grid=(1,),                                       # single grid step (batch folded)
            in_specs=[pl.BlockSpec((R, KMAX * D), lambda i: (0, 0)),
                      pl.BlockSpec((WALL_ROWS, CM), lambda i: (0, 0)),
                      pl.BlockSpec((BALL_ROWS, CM), lambda i: (0, 0))],
            out_specs=pl.BlockSpec((R, CM), lambda i: (0, 0)),
        ),
        compiler_params=pltpu.CompilerParams(dimension_semantics=("arbitrary",)),
        cost_estimate=pl.CostEstimate(flops=FLOPS, transcendentals=0,
                                      bytes_accessed=BYTES),
    )(u1, wall, ball)

    # extract valid rows / valid head lanes and split per task (MoBYMLP_multihead semantics)
    out = y.reshape(B, RPB, CM)[:, DOF:DOF + S, :HEAD]       # (B, S, NT*OUT_DIM)
    return [out[..., i * OUT_DIM:(i + 1) * OUT_DIM] for i in range(NT)]


# ---------------- pure-JAX reference (mirrors PyTorch eval-mode forward) ----------------
def reference(features, p):
    x = features[:, 1:-1, :]
    xn = jnp.transpose(x, (0, 2, 1))                         # NCW like PyTorch
    dn = ('NCH', 'OIH', 'NCH')

    def conv(inp, w, b):
        y = lax.conv_general_dilated(inp, w, (1,), 'SAME', dimension_numbers=dn)
        return y + b[None, :, None]

    h = jnp.concatenate([conv(xn, p['w1'][i], p['b1'][i]) for i in range(NK)], axis=1)
    h = jnp.maximum(h * p['bn1_scale'][None, :, None] + p['bn1_shift'][None, :, None], 0.0)
    h = jnp.concatenate([conv(h, p['w2'][i], p['b2'][i]) for i in range(NK)], axis=1)
    h = jnp.maximum(h * p['bn2_scale'][None, :, None] + p['bn2_shift'][None, :, None], 0.0)
    xc = jnp.transpose(h, (0, 2, 1)).reshape(-1, CM)
    z = xc @ p['wh'].T + p['bh']
    z = jnp.maximum(z * p['bnh_scale'] + p['bnh_shift'], 0.0)
    return [(z @ p['head_w'][i].T + p['head_b'][i]).reshape(B, S, OUT_DIM)
            for i in range(NT)]


if __name__ == "__main__":
    key = jax.random.PRNGKey(0)
    kf, kp = jax.random.split(key)
    features = jax.random.normal(kf, (B, L, D), jnp.float32)
    params = init_params(kp)

    outs = encoder_ssptm_forward(features, params)
    outs = [jax.block_until_ready(o) for o in outs]

    refs = reference(features, params)
    for o, r in zip(outs, refs):
        assert o.shape == (B, S, OUT_DIM)
        if not jnp.allclose(o, r, atol=1e-3, rtol=1e-3):
            raise AssertionError(
                f"kernel/reference mismatch, max abs diff {float(jnp.max(jnp.abs(o - r)))}")

    print("KERNEL_OK")
</pallas_src>

<mosaic_0001>
module attributes {stable_mosaic.version = 11 : i64} {
  func.func @encoder_ssptm_kernel(%arg0: i32, %arg1: memref<48x160xf32, #tpu.memory_space<vmem>>, %arg2: memref<272x16xf32, #tpu.memory_space<vmem>>, %arg3: memref<8x16xf32, #tpu.memory_space<vmem>>, %arg4: memref<48x16xf32, #tpu.memory_space<vmem>>) attributes {dimension_semantics = [#tpu.dimension_semantics<arbitrary>], iteration_bounds = array<i64: 1>, scalar_prefetch = 0 : i64, scratch_operands = 0 : i64, tpu.core_type = #tpu.core_type<tc>, window_params = [{pipeline_mode = #tpu.pipeline_mode<synchronous>, transform_indices = @transform_0, window_bounds = array<i64: 48, 160>}, {pipeline_mode = #tpu.pipeline_mode<synchronous>, transform_indices = @transform_1, window_bounds = array<i64: 272, 16>}, {pipeline_mode = #tpu.pipeline_mode<synchronous>, transform_indices = @transform_2, window_bounds = array<i64: 8, 16>}, {pipeline_mode = #tpu.pipeline_mode<synchronous>, transform_indices = @transform_3, window_bounds = array<i64: 48, 16>}]} {
    %0 = tpu.iota {dimensions = array<i32: 0>} : vector<48x1xi32>
    %c0_i32 = arith.constant 0 : i32
    %1 = vector.broadcast %c0_i32 : i32 to vector<48x1xi32>
    %2 = arith.cmpi slt, %0, %1 : vector<48x1xi32>
    %c4_i32 = arith.constant 4 : i32
    %3 = vector.broadcast %c4_i32 : i32 to vector<48x1xi32>
    %4 = arith.cmpi sge, %0, %3 : vector<48x1xi32>
    %c20_i32 = arith.constant 20 : i32
    %5 = vector.broadcast %c20_i32 : i32 to vector<48x1xi32>
    %6 = arith.cmpi slt, %0, %5 : vector<48x1xi32>
    %7 = arith.andi %4, %6 : vector<48x1xi1>
    %8 = arith.ori %2, %7 : vector<48x1xi1>
    %c28_i32 = arith.constant 28 : i32
    %9 = vector.broadcast %c28_i32 : i32 to vector<48x1xi32>
    %10 = arith.cmpi sge, %0, %9 : vector<48x1xi32>
    %c44_i32 = arith.constant 44 : i32
    %11 = vector.broadcast %c44_i32 : i32 to vector<48x1xi32>
    %12 = arith.cmpi slt, %0, %11 : vector<48x1xi32>
    %13 = arith.andi %10, %12 : vector<48x1xi1>
    %14 = arith.ori %8, %13 : vector<48x1xi1>
    %15 = arith.extui %14 : vector<48x1xi1> to vector<48x1xi32>
    %16 = arith.sitofp %15 : vector<48x1xi32> to vector<48x1xf32>
    %c0 = arith.constant 0 : index
    %c0_0 = arith.constant 0 : index
    %17 = vector.load %arg1[%c0, %c0_0] : memref<48x160xf32, #tpu.memory_space<vmem>>, vector<48x160xf32>
    %c0_1 = arith.constant 0 : index
    %c0_2 = arith.constant 0 : index
    %18 = vector.load %arg2[%c0_1, %c0_2] : memref<272x16xf32, #tpu.memory_space<vmem>>, vector<160x16xf32>
    %cst = arith.constant dense<0.000000e+00> : vector<48x16xf32>
    %19 = tpu.matmul %17, %18, %cst {dimension_numbers = #tpu.dot_dimension_numbers<[1], [0], [0], [1], [0, 0, 1, 1], [], []>} : vector<48x160xf32>, vector<160x16xf32>, vector<48x16xf32> -> vector<48x16xf32>
    %c0_3 = arith.constant 0 : index
    %c0_4 = arith.constant 0 : index
    %20 = vector.load %arg3[%c0_3, %c0_4] : memref<8x16xf32, #tpu.memory_space<vmem>>, vector<1x16xf32>
    %21 = vector.broadcast %20 : vector<1x16xf32> to vector<48x16xf32>
    %22 = arith.addf %19, %21 : vector<48x16xf32>
    %cst_5 = arith.constant 0.000000e+00 : f32
    %23 = vector.broadcast %cst_5 : f32 to vector<48x16xf32>
    %24 = arith.maximumf %22, %23 : vector<48x16xf32>
    %25 = vector.broadcast %16 : vector<48x1xf32> to vector<48x16xf32>
    %26 = arith.mulf %24, %25 : vector<48x16xf32>
    %c2_i32 = arith.constant 2 : i32
    %27 = tpu.dynamic_rotate %26 by %c2_i32 dim 0 : vector<48x16xf32>, i32 -> vector<48x16xf32>
    %c160 = arith.constant 160 : index
    %c0_6 = arith.constant 0 : index
    %28 = vector.load %arg2[%c160, %c0_6] : memref<272x16xf32, #tpu.memory_space<vmem>>, vector<16x16xf32>
    %cst_7 = arith.constant dense<0.000000e+00> : vector<48x16xf32>
    %29 = tpu.matmul %27, %28, %cst_7 {dimension_numbers = #tpu.dot_dimension_numbers<[1], [0], [0], [1], [0, 0, 1, 1], [], []>} : vector<48x16xf32>, vector<16x16xf32>, vector<48x16xf32> -> vector<48x16xf32>
    %c1_i32 = arith.constant 1 : i32
    %30 = tpu.dynamic_rotate %26 by %c1_i32 dim 0 : vector<48x16xf32>, i32 -> vector<48x16xf32>
    %c176 = arith.constant 176 : index
    %c0_8 = arith.constant 0 : index
    %31 = vector.load %arg2[%c176, %c0_8] : memref<272x16xf32, #tpu.memory_space<vmem>>, vector<16x16xf32>
    %cst_9 = arith.constant dense<0.000000e+00> : vector<48x16xf32>
    %32 = tpu.matmul %30, %31, %cst_9 {dimension_numbers = #tpu.dot_dimension_numbers<[1], [0], [0], [1], [0, 0, 1, 1], [], []>} : vector<48x16xf32>, vector<16x16xf32>, vector<48x16xf32> -> vector<48x16xf32>
    %33 = arith.addf %29, %32 : vector<48x16xf32>
    %c192 = arith.constant 192 : index
    %c0_10 = arith.constant 0 : index
    %34 = vector.load %arg2[%c192, %c0_10] : memref<272x16xf32, #tpu.memory_space<vmem>>, vector<16x16xf32>
    %cst_11 = arith.constant dense<0.000000e+00> : vector<48x16xf32>
    %35 = tpu.matmul %26, %34, %cst_11 {dimension_numbers = #tpu.dot_dimension_numbers<[1], [0], [0], [1], [0, 0, 1, 1], [], []>} : vector<48x16xf32>, vector<16x16xf32>, vector<48x16xf32> -> vector<48x16xf32>
    %36 = arith.addf %33, %35 : vector<48x16xf32>
    %c47_i32 = arith.constant 47 : i32
    %37 = tpu.dynamic_rotate %26 by %c47_i32 dim 0 : vector<48x16xf32>, i32 -> vector<48x16xf32>
    %c208 = arith.constant 208 : index
    %c0_12 = arith.constant 0 : index
    %38 = vector.load %arg2[%c208, %c0_12] : memref<272x16xf32, #tpu.memory_space<vmem>>, vector<16x16xf32>
    %cst_13 = arith.constant dense<0.000000e+00> : vector<48x16xf32>
    %39 = tpu.matmul %37, %38, %cst_13 {dimension_numbers = #tpu.dot_dimension_numbers<[1], [0], [0], [1], [0, 0, 1, 1], [], []>} : vector<48x16xf32>, vector<16x16xf32>, vector<48x16xf32> -> vector<48x16xf32>
    %40 = arith.addf %36, %39 : vector<48x16xf32>
    %c46_i32 = arith.constant 46 : i32
    %41 = tpu.dynamic_rotate %26 by %c46_i32 dim 0 : vector<48x16xf32>, i32 -> vector<48x16xf32>
    %c224 = arith.constant 224 : index
    %c0_14 = arith.constant 0 : index
    %42 = vector.load %arg2[%c224, %c0_14] : memref<272x16xf32, #tpu.memory_space<vmem>>, vector<16x16xf32>
    %cst_15 = arith.constant dense<0.000000e+00> : vector<48x16xf32>
    %43 = tpu.matmul %41, %42, %cst_15 {dimension_numbers = #tpu.dot_dimension_numbers<[1], [0], [0], [1], [0, 0, 1, 1], [], []>} : vector<48x16xf32>, vector<16x16xf32>, vector<48x16xf32> -> vector<48x16xf32>
    %44 = arith.addf %40, %43 : vector<48x16xf32>
    %c1 = arith.constant 1 : index
    %c0_16 = arith.constant 0 : index
    %45 = vector.load %arg3[%c1, %c0_16] : memref<8x16xf32, #tpu.memory_space<vmem>>, vector<1x16xf32>
    %46 = vector.broadcast %45 : vector<1x16xf32> to vector<48x16xf32>
    %47 = arith.addf %44, %46 : vector<48x16xf32>
    %cst_17 = arith.constant 0.000000e+00 : f32
    %48 = vector.broadcast %cst_17 : f32 to vector<48x16xf32>
    %49 = arith.maximumf %47, %48 : vector<48x16xf32>
    %c240 = arith.constant 240 : index
    %c0_18 = arith.constant 0 : index
    %50 = vector.load %arg2[%c240, %c0_18] : memref<272x16xf32, #tpu.memory_space<vmem>>, vector<16x16xf32>
    %cst_19 = arith.constant dense<0.000000e+00> : vector<48x16xf32>
    %51 = tpu.matmul %49, %50, %cst_19 {dimension_numbers = #tpu.dot_dimension_numbers<[1], [0], [0], [1], [0, 0, 1, 1], [], []>} : vector<48x16xf32>, vector<16x16xf32>, vector<48x16xf32> -> vector<48x16xf32>
    %c2 = arith.constant 2 : index
    %c0_20 = arith.constant 0 : index
    %52 = vector.load %arg3[%c2, %c0_20] : memref<8x16xf32, #tpu.memory_space<vmem>>, vector<1x16xf32>
    %53 = vector.broadcast %52 : vector<1x16xf32> to vector<48x16xf32>
    %54 = arith.addf %51, %53 : vector<48x16xf32>
    %cst_21 = arith.constant 0.000000e+00 : f32
    %55 = vector.broadcast %cst_21 : f32 to vector<48x16xf32>
    %56 = arith.maximumf %54, %55 : vector<48x16xf32>
    %c256 = arith.constant 256 : index
    %c0_22 = arith.constant 0 : index
    %57 = vector.load %arg2[%c256, %c0_22] : memref<272x16xf32, #tpu.memory_space<vmem>>, vector<16x16xf32>
    %cst_23 = arith.constant dense<0.000000e+00> : vector<48x16xf32>
    %58 = tpu.matmul %56, %57, %cst_23 {dimension_numbers = #tpu.dot_dimension_numbers<[1], [0], [0], [1], [0, 0, 1, 1], [], []>} : vector<48x16xf32>, vector<16x16xf32>, vector<48x16xf32> -> vector<48x16xf32>
    %c3 = arith.constant 3 : index
    %c0_24 = arith.constant 0 : index
    %59 = vector.load %arg3[%c3, %c0_24] : memref<8x16xf32, #tpu.memory_space<vmem>>, vector<1x16xf32>
    %60 = vector.broadcast %59 : vector<1x16xf32> to vector<48x16xf32>
    %61 = arith.addf %58, %60 : vector<48x16xf32>
    %c0_25 = arith.constant 0 : index
    %c0_26 = arith.constant 0 : index
    %62 = vector.load %arg4[%c0_25, %c0_26] : memref<48x16xf32, #tpu.memory_space<vmem>>, vector<48x16xf32>
    tpu.vector_store %arg4[%c0_25, %c0_26], %61 {strides = array<i32>} : memref<48x16xf32, #tpu.memory_space<vmem>>, vector<48x16xf32>,
    return
  }
  func.func @transform_0(%arg0: i32) -> (i32, i32) {
    %c0_i32 = arith.constant 0 : i32
    %c0_i32_0 = arith.constant 0 : i32
    %c0_i32_1 = arith.constant 0 : i32
    return %c0_i32, %c0_i32_0 : i32, i32
  }
  func.func @transform_1(%arg0: i32) -> (i32, i32) {
    %c0_i32 = arith.constant 0 : i32
    %c0_i32_0 = arith.constant 0 : i32
    %c0_i32_1 = arith.constant 0 : i32
    return %c0_i32, %c0_i32_0 : i32, i32
  }
  func.func @transform_2(%arg0: i32) -> (i32, i32) {
    %c0_i32 = arith.constant 0 : i32
    %c0_i32_0 = arith.constant 0 : i32
    %c0_i32_1 = arith.constant 0 : i32
    return %c0_i32, %c0_i32_0 : i32, i32
  }
  func.func @transform_3(%arg0: i32) -> (i32, i32) {
    %c0_i32 = arith.constant 0 : i32
    %c0_i32_0 = arith.constant 0 : i32
    %c0_i32_1 = arith.constant 0 : i32
    return %c0_i32, %c0_i32_0 : i32, i32
  }
}

</mosaic_0001>

<llo_original>
// kernel: tpu_custom_call.1
$region0: #{tpu_custom_call.1}
  #allocation0 [shape = 'u32[]', space=smem, size = 0x4, offset = 0x4, fixed_abs, tag = 'smem constant byte address 0x4 - core index']
  #allocation1 [shape = 'u32[144,128]{1,0:T(1,128)}', space=vmem, size = 0x12000, scoped, tag = 'internal scratch']
  %s0 = inlined_call_operand.vmem [shape: f32[48,160], index: 0, kind: input, shape index: {}]
  %s1 = inlined_call_operand.vmem [shape: f32[272,16], index: 1, kind: input, shape index: {}]
  %s2 = inlined_call_operand.vmem [shape: f32[8,16], index: 2, kind: input, shape index: {}]
  %s3 = inlined_call_operand.vmem [shape: f32[48,16], index: 3, kind: output, shape index: {}]
  %s4 = sld [smem:[#allocation0]]
  $region22: #{tpu_custom_call.1} parent=0
    _
  %s6 = ssub.s32 1, %s4
  %s7 = scalar_select 0, %s6, %s4
  // Predicated region
  $region2: #{tpu_custom_call.1} parent=0 // pred_check
    _
  $region3: #{tpu_custom_call.1} parent=0 // pred_check_branch
    %9 = sbr.rel (0) target = $region5
  $region4: #{tpu_custom_call.1} parent=0 // pred_region
    _
  $region5: #{tpu_custom_call.1} parent=0 // pred_fallthru
    _
  // Predicated region
  $region6: #{tpu_custom_call.1} parent=0 // pred_check
    _
  $region7: #{tpu_custom_call.1} parent=0 // pred_check_branch
    %11 = sbr.rel (0) target = $region9
  $region8: #{tpu_custom_call.1} parent=0 // pred_region
    _
  $region9: #{tpu_custom_call.1} parent=0 // pred_fallthru
    _
  // Predicated region
  $region10: #{tpu_custom_call.1} parent=0 // pred_check
    _
  $region11: #{tpu_custom_call.1} parent=0 // pred_check_branch
    %13 = sbr.rel (0) target = $region13
  $region12: #{tpu_custom_call.1} parent=0 // pred_region
    _
  $region13: #{tpu_custom_call.1} parent=0 // pred_fallthru
    _
  %v14 = vlaneseq
  %v15 = vshrl.u32 %v14, 7
  %v16 = vadd.s32 %v15, 8
  %v17 = vadd.s32 %v15, 16
  %v18 = vadd.s32 %v15, 24
  %v19 = vadd.s32 %v15, 32
  %v20 = vadd.s32 %v15, 40
  %vm21 = vcmp.lt.s32.totalorder %v15, 0
  %vm22 = vcmp.lt.s32.totalorder %v16, 0
  %vm23 = vcmp.lt.s32.totalorder %v17, 0
  %vm24 = vcmp.lt.s32.totalorder %v18, 0
  %vm25 = vcmp.lt.s32.totalorder %v19, 0
  %vm26 = vcmp.lt.s32.totalorder %v20, 0
  %vm27 = vcmp.ge.s32.totalorder %v15, 4
  %vm28 = vcmp.ge.s32.totalorder %v16, 4
  %vm29 = vcmp.ge.s32.totalorder %v17, 4
  %vm30 = vcmp.ge.s32.totalorder %v18, 4
  %vm31 = vcmp.ge.s32.totalorder %v19, 4
  %vm32 = vcmp.ge.s32.totalorder %v20, 4
  %vm33 = vcmp.lt.s32.totalorder %v15, 20
  %vm34 = vcmp.lt.s32.totalorder %v16, 20
  %vm35 = vcmp.lt.s32.totalorder %v17, 20
  %vm36 = vcmp.lt.s32.totalorder %v18, 20
  %vm37 = vcmp.lt.s32.totalorder %v19, 20
  %vm38 = vcmp.lt.s32.totalorder %v20, 20
  %vm39 = vmand %vm27, %vm33
  %vm40 = vmand %vm28, %vm34
  %vm41 = vmand %vm29, %vm35
  %vm42 = vmand %vm30, %vm36
  %vm43 = vmand %vm31, %vm37
  %vm44 = vmand %vm32, %vm38
  %vm45 = vmor %vm21, %vm39
  %vm46 = vmor %vm22, %vm40
  %vm47 = vmor %vm23, %vm41
  %vm48 = vmor %vm24, %vm42
  %vm49 = vmor %vm25, %vm43
  %vm50 = vmor %vm26, %vm44
  %vm51 = vcmp.ge.s32.totalorder %v15, 28
  %vm52 = vcmp.ge.s32.totalorder %v16, 28
  %vm53 = vcmp.ge.s32.totalorder %v17, 28
  %vm54 = vcmp.ge.s32.totalorder %v18, 28
  %vm55 = vcmp.ge.s32.totalorder %v19, 28
  %vm56 = vcmp.ge.s32.totalorder %v20, 28
  %vm57 = vcmp.lt.s32.totalorder %v15, 44
  %vm58 = vcmp.lt.s32.totalorder %v16, 44
  %vm59 = vcmp.lt.s32.totalorder %v17, 44
  %vm60 = vcmp.lt.s32.totalorder %v18, 44
  %vm61 = vcmp.lt.s32.totalorder %v19, 44
  %vm62 = vcmp.lt.s32.totalorder %v20, 44
  %vm63 = vmand %vm51, %vm57
  %vm64 = vmand %vm52, %vm58
  %vm65 = vmand %vm53, %vm59
  %vm66 = vmand %vm54, %vm60
  %vm67 = vmand %vm55, %vm61
  %vm68 = vmand %vm56, %vm62
  %vm69 = vmor %vm45, %vm63
  %vm70 = vmor %vm46, %vm64
  %vm71 = vmor %vm47, %vm65
  %vm72 = vmor %vm48, %vm66
  %vm73 = vmor %vm49, %vm67
  %vm74 = vmor %vm50, %vm68
  %v75 = vsel %vm69, 1, 0
  %v76 = vsel %vm70, 1, 0
  %v77 = vsel %vm71, 1, 0
  %v78 = vsel %vm72, 1, 0
  %v79 = vsel %vm73, 1, 0
  %v80 = vsel %vm74, 1, 0
  %v81 = vcvt.s32.f32 %v75
  %v82 = vcvt.s32.f32 %v76
  %v83 = vcvt.s32.f32 %v77
  %v84 = vcvt.s32.f32 %v78
  %v85 = vcvt.s32.f32 %v79
  %v86 = vcvt.s32.f32 %v80
  %v87 = vld [vmem:[%s0] sm:$0xff]
  %v88 = vld [vmem:[%s0 + $0x8] sm:$0xff]
  %v89 = vld [vmem:[%s0 + $0x10] sm:$0xff]
  %v90 = vld [vmem:[%s0 + $0x18] sm:$0xff]
  %v91 = vld [vmem:[%s0 + $0x20] sm:$0xff]
  %v92 = vld [vmem:[%s0 + $0x28] sm:$0xff]
  %v93 = vld [vmem:[%s0 + $0x30] sm:$0xff]
  %v94 = vld [vmem:[%s0 + $0x38] sm:$0xff]
  %v95 = vld [vmem:[%s0 + $0x40] sm:$0xff]
  %v96 = vld [vmem:[%s0 + $0x48] sm:$0xff]
  %v97 = vld [vmem:[%s0 + $0x50] sm:$0xff]
  %v98 = vld [vmem:[%s0 + $0x58] sm:$0xff]
  %v99 = vld [vmem:[%s1] sm:$0xff]
  %v100 = vld [vmem:[%s1 + $0x8] sm:$0xff]
  %v101 = vld [vmem:[%s1 + $0x10] sm:$0xff]
  %v102 = vld [vmem:[%s1 + $0x18] sm:$0xff]
  %v103 = vld [vmem:[%s1 + $0x20] sm:$0xff]
  %v104 = vld [vmem:[%s1 + $0x28] sm:$0xff]
  %v105 = vld [vmem:[%s1 + $0x30] sm:$0xff]
  %v106 = vld [vmem:[%s1 + $0x38] sm:$0xff]
  %v107 = vld [vmem:[%s1 + $0x40] sm:$0xff]
  %v108 = vld [vmem:[%s1 + $0x48] sm:$0xff]
  %v109 = vld [vmem:[%s1 + $0x50] sm:$0xff]
  %v110 = vld [vmem:[%s1 + $0x58] sm:$0xff]
  %v111 = vld [vmem:[%s1 + $0x60] sm:$0xff]
  %v112 = vld [vmem:[%s1 + $0x68] sm:$0xff]
  %v113 = vld [vmem:[%s1 + $0x70] sm:$0xff]
  %v114 = vld [vmem:[%s1 + $0x78] sm:$0xff]
  %v115 = vld [vmem:[%s1 + $0x80] sm:$0xff]
  %v116 = vld [vmem:[%s1 + $0x88] sm:$0xff]
  %v117 = vld [vmem:[%s1 + $0x90] sm:$0xff]
  %v118 = vld [vmem:[%s1 + $0x98] sm:$0xff]
  %v119 = vld [vmem:[%s2] sm:$0x1]
  %v120 = vlaneseq
  %v121 = vshrl.u32 %v120, 7
  %v122 = vsub.s32 0, %v121
  %v123 = vrot.slane %v119, %v122
  %vm124 = vcmask 261120
  %v126 = vsel %vm124, %v88, 0
  %v129 = vsel %vm124, %v90, 0
  %v132 = vsel %vm124, %v92, 0
  %v135 = vsel %vm124, %v94, 0
  %v138 = vsel %vm124, %v96, 0
  %v141 = vsel %vm124, %v98, 0
  %143 = vmatprep.subr.mxu0 0.0
  %144 = vmatpush1.msra.mxu0 %v99
  %145 = vmatprep.subr.mxu0 0.0
  %146 = vmatpush1.msra.mxu0 %v100
  %147 = vmatprep.subr.mxu0 0.0
  %148 = vmatpush1.msra.mxu0 %v101
  %149 = vmatprep.subr.mxu0 0.0
  %150 = vmatpush1.msra.mxu0 %v102
  %151 = vmatprep.subr.mxu0 0.0
  %152 = vmatpush1.msra.mxu0 %v103
  %153 = vmatprep.subr.mxu0 0.0
  %154 = vmatpush1.msra.mxu0 %v104
  %155 = vmatprep.subr.mxu0 0.0
  %156 = vmatpush1.msra.mxu0 %v105
  %157 = vmatprep.subr.mxu0 0.0
  %158 = vmatpush1.msra.mxu0 %v106
  %159 = vmatprep.subr.mxu0 0.0
  %160 = vmatpush1.msra.mxu0 %v107
  %161 = vmatprep.subr.mxu0 0.0
  %162 = vmatpush1.msra.mxu0 %v108
  %163 = vmatprep.subr.mxu0 0.0
  %164 = vmatpush1.msra.mxu0 %v109
  %165 = vmatprep.subr.mxu0 0.0
  %166 = vmatpush1.msra.mxu0 %v110
  %167 = vmatprep.subr.mxu0 0.0
  %168 = vmatpush1.msra.mxu0 %v111
  %169 = vmatprep.subr.mxu0 0.0
  %170 = vmatpush1.msra.mxu0 %v112
  %171 = vmatprep.subr.mxu0 0.0
  %172 = vmatpush1.msra.mxu0 %v113
  %173 = vmatprep.subr.mxu0 0.0
  %174 = vmatpush1.msra.mxu0 %v114
  %175 = vmatprep.subr.mxu0 0.0
  %176 = vmatpush1.msra.mxu0 %v115
  %177 = vmatprep.subr.mxu0 0.0
  %178 = vmatpush1.msra.mxu0 %v116
  %179 = vmatprep.subr.mxu0 0.0
  %180 = vmatpush1.msra.mxu0 %v117
  %181 = vmatprep.subr.mxu0 0.0
  %182 = vmatpush1.msra.mxu0 %v118
  %183 = vmatprep.subr.mxu0 0.0
  %184 = vmatpush1.msra.mxu0 0.0
  %185 = vmatprep.subr.mxu0 0.0
  %186 = vmatpush1.msra.mxu0 0.0
  %187 = vmatprep.subr.mxu0 0.0
  %188 = vmatpush1.msra.mxu0 0.0
  %189 = vmatprep.subr.mxu0 0.0
  %190 = vmatpush1.msra.mxu0 0.0
  %191 = vmatprep.subr.mxu0 0.0
  %192 = vmatpush1.msra.mxu0 0.0
  %193 = vmatprep.subr.mxu0 0.0
  %194 = vmatpush1.msra.mxu0 0.0
  %195 = vmatprep.subr.mxu0 0.0
  %196 = vmatpush1.msra.mxu0 0.0
  %197 = vmatprep.subr.mxu0 0.0
  %198 = vmatpush1.msra.mxu0 0.0
  %199 = vmatprep.subr.mxu0 0.0
  %200 = vmatpush1.msra.mxu0 0.0
  %201 = vmatprep.subr.mxu0 0.0
  %202 = vmatpush1.msra.mxu0 0.0
  %203 = vmatprep.subr.mxu0 0.0
  %204 = vmatpush1.msra.mxu0 0.0
  %205 = vmatprep.subr.mxu0 0.0
  %206 = vmatpush1.msra.mxu0 0.0
  %207 = vmatprep.mubr.f32.mxu0 %v126
  %208 = vmatmul.mubr.f32.gmra.mrb[0].mxu0 %v87
  %v209 = vpop.f32.mrb[0].mxu0
  %v210 = vadd.f32 %v123, %v209
  %v211 = vpop.f32.mrb[0].mxu0
  %212 = vmatprep.mubr.f32.mxu0 %v129
  %213 = vmatmul.mubr.f32.gmra.mrb[0].mxu0 %v89
  %v214 = vpop.f32.mrb[0].mxu0
  %v215 = vadd.f32 %v123, %v214
  %v216 = vpop.f32.mrb[0].mxu0
  %217 = vmatprep.mubr.f32.mxu0 %v132
  %218 = vmatmul.mubr.f32.gmra.mrb[0].mxu0 %v91
  %v219 = vpop.f32.mrb[0].mxu0
  %v220 = vadd.f32 %v123, %v219
  %v221 = vpop.f32.mrb[0].mxu0
  %222 = vmatprep.mubr.f32.mxu0 %v135
  %223 = vmatmul.mubr.f32.gmra.mrb[0].mxu0 %v93
  %v224 = vpop.f32.mrb[0].mxu0
  %v225 = vadd.f32 %v123, %v224
  %v226 = vpop.f32.mrb[0].mxu0
  %227 = vmatprep.mubr.f32.mxu0 %v138
  %228 = vmatmul.mubr.f32.gmra.mrb[0].mxu0 %v95
  %v229 = vpop.f32.mrb[0].mxu0
  %v230 = vadd.f32 %v123, %v229
  %v231 = vpop.f32.mrb[0].mxu0
  %232 = vmatprep.mubr.f32.mxu0 %v141
  %233 = vmatmul.mubr.f32.gmra.mrb[0].mxu0 %v97
  %v234 = vpop.f32.mrb[0].mxu0
  %v235 = vadd.f32 %v123, %v234
  %v236 = vpop.f32.mrb[0].mxu0
  %237 = vdwg.mxu0
  %v238 = vmax.f32 %v210, 0.0
  %v239 = vmax.f32 %v215, 0.0
  %v240 = vmax.f32 %v220, 0.0
  %v241 = vmax.f32 %v225, 0.0
  %v242 = vmax.f32 %v230, 0.0
  %v243 = vmax.f32 %v235, 0.0
  %v244 = vmul.f32 %v238, %v81
  %v245 = vmul.f32 %v239, %v82
  %v246 = vmul.f32 %v240, %v83
  %v247 = vmul.f32 %v241, %v84
  %v248 = vmul.f32 %v242, %v85
  %v249 = vmul.f32 %v243, %v86
  %v250 = vrot.slane %v244, 6
  %v251 = vrot.slane %v245, 6
  %v252 = vrot.slane %v246, 6
  %v253 = vrot.slane %v247, 6
  %v254 = vrot.slane %v248, 6
  %v255 = vrot.slane %v249, 6
  %vm256 = vcmp.lt.s32.totalorder %v15, 2
  %v257 = vsel %vm256, %v254, %v255
  %v258 = vsel %vm256, %v253, %v254
  %v259 = vsel %vm256, %v252, %v253
  %v260 = vsel %vm256, %v251, %v252
  %v261 = vsel %vm256, %v250, %v251
  %v262 = vsel %vm256, %v255, %v250
  %v263 = vld [vmem:[%s1 + $0xa0] sm:$0xff]
  %v264 = vld [vmem:[%s1 + $0xa8] sm:$0xff]
  %v265 = vrot.slane %v244, 7
  %v266 = vrot.slane %v245, 7
  %v267 = vrot.slane %v246, 7
  %v268 = vrot.slane %v247, 7
  %v269 = vrot.slane %v248, 7
  %v270 = vrot.slane %v249, 7
  %vm271 = vcmp.lt.s32.totalorder %v15, 1
  %v272 = vsel %vm271, %v269, %v270
  %v273 = vsel %vm271, %v268, %v269
  %v274 = vsel %vm271, %v267, %v268
  %v275 = vsel %vm271, %v266, %v267
  %v276 = vsel %vm271, %v265, %v266
  %v277 = vsel %vm271, %v270, %v265
  %v278 = vld [vmem:[%s1 + $0xb0] sm:$0xff]
  %v279 = vld [vmem:[%s1 + $0xb8] sm:$0xff]
  %vm280 = vcmask 130048
  %v282 = vsel %vm280, %v277, 0
  %v285 = vsel %vm280, %v276, 0
  %v288 = vsel %vm280, %v275, 0
  %v291 = vsel %vm280, %v274, 0
  %v294 = vsel %vm280, %v273, 0
  %v297 = vsel %vm280, %v272, 0
  %299 = vmatprep.subr.mxu0 0.0
  %300 = vmatpush1.msra.mxu0 %v278
  %301 = vmatprep.subr.mxu0 0.0
  %302 = vmatpush1.msra.mxu0 %v279
  %303 = vmatprep.subr.mxu0 0.0
  %304 = vmatpush1.msra.mxu0 0.0
  %305 = vmatprep.subr.mxu0 0.0
  %306 = vmatpush1.msra.mxu0 0.0
  %307 = vmatprep.subr.mxu0 0.0
  %308 = vmatpush1.msra.mxu0 0.0
  %309 = vmatprep.subr.mxu0 0.0
  %310 = vmatpush1.msra.mxu0 0.0
  %311 = vmatprep.subr.mxu0 0.0
  %312 = vmatpush1.msra.mxu0 0.0
  %313 = vmatprep.subr.mxu0 0.0
  %314 = vmatpush1.msra.mxu0 0.0
  %315 = vmatprep.subr.mxu0 0.0
  %316 = vmatpush1.msra.mxu0 0.0
  %317 = vmatprep.subr.mxu0 0.0
  %318 = vmatpush1.msra.mxu0 0.0
  %319 = vmatprep.subr.mxu0 0.0
  %320 = vmatpush1.msra.mxu0 0.0
  %321 = vmatprep.subr.mxu0 0.0
  %322 = vmatpush1.msra.mxu0 0.0
  %323 = vmatprep.subr.mxu0 0.0
  %324 = vmatpush1.msra.mxu0 0.0
  %325 = vmatprep.subr.mxu0 0.0
  %326 = vmatpush1.msra.mxu0 0.0
  %327 = vmatprep.subr.mxu0 0.0
  %328 = vmatpush1.msra.mxu0 0.0
  %329 = vmatprep.subr.mxu0 0.0
  %330 = vmatpush1.msra.mxu0 0.0
  %331 = vmatprep.subr.mxu0 0.0
  %332 = vmatpush1.msra.mxu0 0.0
  %333 = vmatprep.subr.mxu0 0.0
  %334 = vmatpush1.msra.mxu0 0.0
  %335 = vmatprep.subr.mxu0 0.0
  %336 = vmatpush1.msra.mxu0 0.0
  %337 = vmatprep.subr.mxu0 0.0
  %338 = vmatpush1.msra.mxu0 0.0
  %339 = vmatprep.subr.mxu0 0.0
  %340 = vmatpush1.msra.mxu0 0.0
  %341 = vmatprep.subr.mxu0 0.0
  %342 = vmatpush1.msra.mxu0 0.0
  %343 = vmatprep.subr.mxu0 0.0
  %344 = vmatpush1.msra.mxu0 0.0
  %345 = vmatprep.subr.mxu0 0.0
  %346 = vmatpush1.msra.mxu0 0.0
  %347 = vmatprep.subr.mxu0 0.0
  %348 = vmatpush1.msra.mxu0 0.0
  %349 = vmatprep.subr.mxu0 0.0
  %350 = vmatpush1.msra.mxu0 0.0
  %351 = vmatprep.subr.mxu0 0.0
  %352 = vmatpush1.msra.mxu0 0.0
  %353 = vmatprep.subr.mxu0 0.0
  %354 = vmatpush1.msra.mxu0 0.0
  %355 = vmatprep.subr.mxu0 0.0
  %356 = vmatpush1.msra.mxu0 0.0
  %357 = vmatprep.subr.mxu0 0.0
  %358 = vmatpush1.msra.mxu0 0.0
  %359 = vmatprep.subr.mxu0 0.0
  %360 = vmatpush1.msra.mxu0 0.0
  %361 = vmatprep.subr.mxu0 0.0
  %362 = vmatpush1.msra.mxu0 0.0
  %363 = vmatprep.mubr.f32.mxu0 0.0
  %364 = vmatmul.mubr.f32.gmra.mrb[0].mxu0 %v282
  %v365 = vpop.f32.mrb[0].mxu0
  %v366 = vadd.f32 0.0, %v365
  %v367 = vpop.f32.mrb[0].mxu0
  %368 = vmatprep.mubr.f32.mxu0 0.0
  %369 = vmatmul.mubr.f32.gmra.mrb[0].mxu0 %v285
  %v370 = vpop.f32.mrb[0].mxu0
  %v371 = vadd.f32 0.0, %v370
  %v372 = vpop.f32.mrb[0].mxu0
  %373 = vmatprep.mubr.f32.mxu0 0.0
  %374 = vmatmul.mubr.f32.gmra.mrb[0].mxu0 %v288
  %v375 = vpop.f32.mrb[0].mxu0
  %v376 = vadd.f32 0.0, %v375
  %v377 = vpop.f32.mrb[0].mxu0
  %378 = vmatprep.mubr.f32.mxu0 0.0
  %379 = vmatmul.mubr.f32.gmra.mrb[0].mxu0 %v291
  %v380 = vpop.f32.mrb[0].mxu0
  %v381 = vadd.f32 0.0, %v380
  %v382 = vpop.f32.mrb[0].mxu0
  %383 = vmatprep.mubr.f32.mxu0 0.0
  %384 = vmatmul.mubr.f32.gmra.mrb[0].mxu0 %v294
  %v385 = vpop.f32.mrb[0].mxu0
  %v386 = vadd.f32 0.0, %v385
  %v387 = vpop.f32.mrb[0].mxu0
  %388 = vmatprep.mubr.f32.mxu0 0.0
  %389 = vmatmul.mubr.f32.gmra.mrb[0].mxu0 %v297
  %v390 = vpop.f32.mrb[0].mxu0
  %v391 = vadd.f32 0.0, %v390
  %v392 = vpop.f32.mrb[0].mxu0
  %393 = vdwg.mxu0
  %v395 = vsel %vm280, %v262, 0
  %v398 = vsel %vm280, %v261, 0
  %v401 = vsel %vm280, %v260, 0
  %v404 = vsel %vm280, %v259, 0
  %v407 = vsel %vm280, %v258, 0
  %v410 = vsel %vm280, %v257, 0
  %412 = vmatprep.subr.mxu0 0.0
  %413 = vmatpush1.msra.mxu0 %v263
  %414 = vmatprep.subr.mxu0 0.0
  %415 = vmatpush1.msra.mxu0 %v264
  %416 = vmatprep.subr.mxu0 0.0
  %417 = vmatpush1.msra.mxu0 0.0
  %418 = vmatprep.subr.mxu0 0.0
  %419 = vmatpush1.msra.mxu0 0.0
  %420 = vmatprep.subr.mxu0 0.0
  %421 = vmatpush1.msra.mxu0 0.0
  %422 = vmatprep.subr.mxu0 0.0
  %423 = vmatpush1.msra.mxu0 0.0
  %424 = vmatprep.subr.mxu0 0.0
  %425 = vmatpush1.msra.mxu0 0.0
  %426 = vmatprep.subr.mxu0 0.0
  %427 = vmatpush1.msra.mxu0 0.0
  %428 = vmatprep.subr.mxu0 0.0
  %429 = vmatpush1.msra.mxu0 0.0
  %430 = vmatprep.subr.mxu0 0.0
  %431 = vmatpush1.msra.mxu0 0.0
  %432 = vmatprep.subr.mxu0 0.0
  %433 = vmatpush1.msra.mxu0 0.0
  %434 = vmatprep.subr.mxu0 0.0
  %435 = vmatpush1.msra.mxu0 0.0
  %436 = vmatprep.subr.mxu0 0.0
  %437 = vmatpush1.msra.mxu0 0.0
  %438 = vmatprep.subr.mxu0 0.0
  %439 = vmatpush1.msra.mxu0 0.0
  %440 = vmatprep.subr.mxu0 0.0
  %441 = vmatpush1.msra.mxu0 0.0
  %442 = vmatprep.subr.mxu0 0.0
  %443 = vmatpush1.msra.mxu0 0.0
  %444 = vmatprep.subr.mxu0 0.0
  %445 = vmatpush1.msra.mxu0 0.0
  %446 = vmatprep.subr.mxu0 0.0
  %447 = vmatpush1.msra.mxu0 0.0
  %448 = vmatprep.subr.mxu0 0.0
  %449 = vmatpush1.msra.mxu0 0.0
  %450 = vmatprep.subr.mxu0 0.0
  %451 = vmatpush1.msra.mxu0 0.0
  %452 = vmatprep.subr.mxu0 0.0
  %453 = vmatpush1.msra.mxu0 0.0
  %454 = vmatprep.subr.mxu0 0.0
  %455 = vmatpush1.msra.mxu0 0.0
  %456 = vmatprep.subr.mxu0 0.0
  %457 = vmatpush1.msra.mxu0 0.0
  %458 = vmatprep.subr.mxu0 0.0
  %459 = vmatpush1.msra.mxu0 0.0
  %460 = vmatprep.subr.mxu0 0.0
  %461 = vmatpush1.msra.mxu0 0.0
  %462 = vmatprep.subr.mxu0 0.0
  %463 = vmatpush1.msra.mxu0 0.0
  %464 = vmatprep.subr.mxu0 0.0
  %465 = vmatpush1.msra.mxu0 0.0
  %466 = vmatprep.subr.mxu0 0.0
  %467 = vmatpush1.msra.mxu0 0.0
  %468 = vmatprep.subr.mxu0 0.0
  %469 = vmatpush1.msra.mxu0 0.0
  %470 = vmatprep.subr.mxu0 0.0
  %471 = vmatpush1.msra.mxu0 0.0
  %472 = vmatprep.subr.mxu0 0.0
  %473 = vmatpush1.msra.mxu0 0.0
  %474 = vmatprep.subr.mxu0 0.0
  %475 = vmatpush1.msra.mxu0 0.0
  %476 = vmatprep.mubr.f32.mxu0 0.0
  %477 = vmatmul.mubr.f32.gmra.mrb[0].mxu0 %v395
  %v478 = vpop.f32.mrb[0].mxu0
  %v479 = vadd.f32 %v366, %v478
  %v480 = vpop.f32.mrb[0].mxu0
  %481 = vmatprep.mubr.f32.mxu0 0.0
  %482 = vmatmul.mubr.f32.gmra.mrb[0].mxu0 %v398
  %v483 = vpop.f32.mrb[0].mxu0
  %v484 = vadd.f32 %v371, %v483
  %v485 = vpop.f32.mrb[0].mxu0
  %486 = vmatprep.mubr.f32.mxu0 0.0
  %487 = vmatmul.mubr.f32.gmra.mrb[0].mxu0 %v401
  %v488 = vpop.f32.mrb[0].mxu0
  %v489 = vadd.f32 %v376, %v488
  %v490 = vpop.f32.mrb[0].mxu0
  %491 = vmatprep.mubr.f32.mxu0 0.0
  %492 = vmatmul.mubr.f32.gmra.mrb[0].mxu0 %v404
  %v493 = vpop.f32.mrb[0].mxu0
  %v494 = vadd.f32 %v381, %v493
  %v495 = vpop.f32.mrb[0].mxu0
  %496 = vmatprep.mubr.f32.mxu0 0.0
  %497 = vmatmul.mubr.f32.gmra.mrb[0].mxu0 %v407
  %v498 = vpop.f32.mrb[0].mxu0
  %v499 = vadd.f32 %v386, %v498
  %v500 = vpop.f32.mrb[0].mxu0
  %501 = vmatprep.mubr.f32.mxu0 0.0
  %502 = vmatmul.mubr.f32.gmra.mrb[0].mxu0 %v410
  %v503 = vpop.f32.mrb[0].mxu0
  %v504 = vadd.f32 %v391, %v503
  %v505 = vpop.f32.mrb[0].mxu0
  %506 = vdwg.mxu0
  %v507 = vld [vmem:[%s1 + $0xc0] sm:$0xff]
  %v508 = vld [vmem:[%s1 + $0xc8] sm:$0xff]
  %v510 = vsel %vm280, %v244, 0
  %v513 = vsel %vm280, %v245, 0
  %v516 = vsel %vm280, %v246, 0
  %v519 = vsel %vm280, %v247, 0
  %v522 = vsel %vm280, %v248, 0
  %v525 = vsel %vm280, %v249, 0
  %527 = vmatprep.subr.mxu0 0.0
  %528 = vmatpush1.msra.mxu0 %v507
  %529 = vmatprep.subr.mxu0 0.0
  %530 = vmatpush1.msra.mxu0 %v508
  %531 = vmatprep.subr.mxu0 0.0
  %532 = vmatpush1.msra.mxu0 0.0
  %533 = vmatprep.subr.mxu0 0.0
  %534 = vmatpush1.msra.mxu0 0.0
  %535 = vmatprep.subr.mxu0 0.0
  %536 = vmatpush1.msra.mxu0 0.0
  %537 = vmatprep.subr.mxu0 0.0
  %538 = vmatpush1.msra.mxu0 0.0
  %539 = vmatprep.subr.mxu0 0.0
  %540 = vmatpush1.msra.mxu0 0.0
  %541 = vmatprep.subr.mxu0 0.0
  %542 = vmatpush1.msra.mxu0 0.0
  %543 = vmatprep.subr.mxu0 0.0
  %544 = vmatpush1.msra.mxu0 0.0
  %545 = vmatprep.subr.mxu0 0.0
  %546 = vmatpush1.msra.mxu0 0.0
  %547 = vmatprep.subr.mxu0 0.0
  %548 = vmatpush1.msra.mxu0 0.0
  %549 = vmatprep.subr.mxu0 0.0
  %550 = vmatpush1.msra.mxu0 0.0
  %551 = vmatprep.subr.mxu0 0.0
  %552 = vmatpush1.msra.mxu0 0.0
  %553 = vmatprep.subr.mxu0 0.0
  %554 = vmatpush1.msra.mxu0 0.0
  %555 = vmatprep.subr.mxu0 0.0
  %556 = vmatpush1.msra.mxu0 0.0
  %557 = vmatprep.subr.mxu0 0.0
  %558 = vmatpush1.msra.mxu0 0.0
  %559 = vmatprep.subr.mxu0 0.0
  %560 = vmatpush1.msra.mxu0 0.0
  %561 = vmatprep.subr.mxu0 0.0
  %562 = vmatpush1.msra.mxu0 0.0
  %563 = vmatprep.subr.mxu0 0.0
  %564 = vmatpush1.msra.mxu0 0.0
  %565 = vmatprep.subr.mxu0 0.0
  %566 = vmatpush1.msra.mxu0 0.0
  %567 = vmatprep.subr.mxu0 0.0
  %568 = vmatpush1.msra.mxu0 0.0
  %569 = vmatprep.subr.mxu0 0.0
  %570 = vmatpush1.msra.mxu0 0.0
  %571 = vmatprep.subr.mxu0 0.0
  %572 = vmatpush1.msra.mxu0 0.0
  %573 = vmatprep.subr.mxu0 0.0
  %574 = vmatpush1.msra.mxu0 0.0
  %575 = vmatprep.subr.mxu0 0.0
  %576 = vmatpush1.msra.mxu0 0.0
  %577 = vmatprep.subr.mxu0 0.0
  %578 = vmatpush1.msra.mxu0 0.0
  %579 = vmatprep.subr.mxu0 0.0
  %580 = vmatpush1.msra.mxu0 0.0
  %581 = vmatprep.subr.mxu0 0.0
  %582 = vmatpush1.msra.mxu0 0.0
  %583 = vmatprep.subr.mxu0 0.0
  %584 = vmatpush1.msra.mxu0 0.0
  %585 = vmatprep.subr.mxu0 0.0
  %586 = vmatpush1.msra.mxu0 0.0
  %587 = vmatprep.subr.mxu0 0.0
  %588 = vmatpush1.msra.mxu0 0.0
  %589 = vmatprep.subr.mxu0 0.0
  %590 = vmatpush1.msra.mxu0 0.0
  %591 = vmatprep.mubr.f32.mxu0 0.0
  %592 = vmatmul.mubr.f32.gmra.mrb[0].mxu0 %v510
  %v593 = vpop.f32.mrb[0].mxu0
  %v594 = vadd.f32 0.0, %v593
  %v595 = vpop.f32.mrb[0].mxu0
  %596 = vmatprep.mubr.f32.mxu0 0.0
  %597 = vmatmul.mubr.f32.gmra.mrb[0].mxu0 %v513
  %v598 = vpop.f32.mrb[0].mxu0
  %v599 = vadd.f32 0.0, %v598
  %v600 = vpop.f32.mrb[0].mxu0
  %601 = vmatprep.mubr.f32.mxu0 0.0
  %602 = vmatmul.mubr.f32.gmra.mrb[0].mxu0 %v516
  %v603 = vpop.f32.mrb[0].mxu0
  %v604 = vadd.f32 0.0, %v603
  %v605 = vpop.f32.mrb[0].mxu0
  %606 = vmatprep.mubr.f32.mxu0 0.0
  %607 = vmatmul.mubr.f32.gmra.mrb[0].mxu0 %v519
  %v608 = vpop.f32.mrb[0].mxu0
  %v609 = vadd.f32 0.0, %v608
  %v610 = vpop.f32.mrb[0].mxu0
  %611 = vmatprep.mubr.f32.mxu0 0.0
  %612 = vmatmul.mubr.f32.gmra.mrb[0].mxu0 %v522
  %v613 = vpop.f32.mrb[0].mxu0
  %v614 = vadd.f32 0.0, %v613
  %v615 = vpop.f32.mrb[0].mxu0
  %616 = vmatprep.mubr.f32.mxu0 0.0
  %617 = vmatmul.mubr.f32.gmra.mrb[0].mxu0 %v525
  %v618 = vpop.f32.mrb[0].mxu0
  %v619 = vadd.f32 0.0, %v618
  %v620 = vpop.f32.mrb[0].mxu0
  %621 = vdwg.mxu0
  %v622 = vadd.f32 %v479, %v594
  %v623 = vadd.f32 %v484, %v599
  %v624 = vadd.f32 %v489, %v604
  %v625 = vadd.f32 %v494, %v609
  %v626 = vadd.f32 %v499, %v614
  %v627 = vadd.f32 %v504, %v619
  %v628 = vrot.slane %v244, 1
  %v629 = vrot.slane %v245, 1
  %v630 = vrot.slane %v246, 1
  %v631 = vrot.slane %v247, 1
  %v632 = vrot.slane %v248, 1
  %v633 = vrot.slane %v249, 1
  %vm634 = vcmp.lt.s32.totalorder %v15, 7
  %v635 = vsel %vm634, %v632, %v633
  %v636 = vsel %vm634, %v631, %v632
  %v637 = vsel %vm634, %v630, %v631
  %v638 = vsel %vm634, %v629, %v630
  %v639 = vsel %vm634, %v628, %v629
  %v640 = vsel %vm634, %v633, %v628
  %v641 = vld [vmem:[%s1 + $0xd0] sm:$0xff]
  %v642 = vld [vmem:[%s1 + $0xd8] sm:$0xff]
  %v644 = vsel %vm280, %v639, 0
  %v647 = vsel %vm280, %v638, 0
  %v650 = vsel %vm280, %v637, 0
  %v653 = vsel %vm280, %v636, 0
  %v656 = vsel %vm280, %v635, 0
  %v659 = vsel %vm280, %v640, 0
  %661 = vmatprep.subr.mxu0 0.0
  %662 = vmatpush1.msra.mxu0 %v641
  %663 = vmatprep.subr.mxu0 0.0
  %664 = vmatpush1.msra.mxu0 %v642
  %665 = vmatprep.subr.mxu0 0.0
  %666 = vmatpush1.msra.mxu0 0.0
  %667 = vmatprep.subr.mxu0 0.0
  %668 = vmatpush1.msra.mxu0 0.0
  %669 = vmatprep.subr.mxu0 0.0
  %670 = vmatpush1.msra.mxu0 0.0
  %671 = vmatprep.subr.mxu0 0.0
  %672 = vmatpush1.msra.mxu0 0.0
  %673 = vmatprep.subr.mxu0 0.0
  %674 = vmatpush1.msra.mxu0 0.0
  %675 = vmatprep.subr.mxu0 0.0
  %676 = vmatpush1.msra.mxu0 0.0
  %677 = vmatprep.subr.mxu0 0.0
  %678 = vmatpush1.msra.mxu0 0.0
  %679 = vmatprep.subr.mxu0 0.0
  %680 = vmatpush1.msra.mxu0 0.0
  %681 = vmatprep.subr.mxu0 0.0
  %682 = vmatpush1.msra.mxu0 0.0
  %683 = vmatprep.subr.mxu0 0.0
  %684 = vmatpush1.msra.mxu0 0.0
  %685 = vmatprep.subr.mxu0 0.0
  %686 = vmatpush1.msra.mxu0 0.0
  %687 = vmatprep.subr.mxu0 0.0
  %688 = vmatpush1.msra.mxu0 0.0
  %689 = vmatprep.subr.mxu0 0.0
  %690 = vmatpush1.msra.mxu0 0.0
  %691 = vmatprep.subr.mxu0 0.0
  %692 = vmatpush1.msra.mxu0 0.0
  %693 = vmatprep.subr.mxu0 0.0
  %694 = vmatpush1.msra.mxu0 0.0
  %695 = vmatprep.subr.mxu0 0.0
  %696 = vmatpush1.msra.mxu0 0.0
  %697 = vmatprep.subr.mxu0 0.0
  %698 = vmatpush1.msra.mxu0 0.0
  %699 = vmatprep.subr.mxu0 0.0
  %700 = vmatpush1.msra.mxu0 0.0
  %701 = vmatprep.subr.mxu0 0.0
  %702 = vmatpush1.msra.mxu0 0.0
  %703 = vmatprep.subr.mxu0 0.0
  %704 = vmatpush1.msra.mxu0 0.0
  %705 = vmatprep.subr.mxu0 0.0
  %706 = vmatpush1.msra.mxu0 0.0
  %707 = vmatprep.subr.mxu0 0.0
  %708 = vmatpush1.msra.mxu0 0.0
  %709 = vmatprep.subr.mxu0 0.0
  %710 = vmatpush1.msra.mxu0 0.0
  %711 = vmatprep.subr.mxu0 0.0
  %712 = vmatpush1.msra.mxu0 0.0
  %713 = vmatprep.subr.mxu0 0.0
  %714 = vmatpush1.msra.mxu0 0.0
  %715 = vmatprep.subr.mxu0 0.0
  %716 = vmatpush1.msra.mxu0 0.0
  %717 = vmatprep.subr.mxu0 0.0
  %718 = vmatpush1.msra.mxu0 0.0
  %719 = vmatprep.subr.mxu0 0.0
  %720 = vmatpush1.msra.mxu0 0.0
  %721 = vmatprep.subr.mxu0 0.0
  %722 = vmatpush1.msra.mxu0 0.0
  %723 = vmatprep.subr.mxu0 0.0
  %724 = vmatpush1.msra.mxu0 0.0
  %725 = vmatprep.mubr.f32.mxu0 0.0
  %726 = vmatmul.mubr.f32.gmra.mrb[0].mxu0 %v644
  %v727 = vpop.f32.mrb[0].mxu0
  %v728 = vadd.f32 0.0, %v727
  %v729 = vpop.f32.mrb[0].mxu0
  %730 = vmatprep.mubr.f32.mxu0 0.0
  %731 = vmatmul.mubr.f32.gmra.mrb[0].mxu0 %v647
  %v732 = vpop.f32.mrb[0].mxu0
  %v733 = vadd.f32 0.0, %v732
  %v734 = vpop.f32.mrb[0].mxu0
  %735 = vmatprep.mubr.f32.mxu0 0.0
  %736 = vmatmul.mubr.f32.gmra.mrb[0].mxu0 %v650
  %v737 = vpop.f32.mrb[0].mxu0
  %v738 = vadd.f32 0.0, %v737
  %v739 = vpop.f32.mrb[0].mxu0
  %740 = vmatprep.mubr.f32.mxu0 0.0
  %741 = vmatmul.mubr.f32.gmra.mrb[0].mxu0 %v653
  %v742 = vpop.f32.mrb[0].mxu0
  %v743 = vadd.f32 0.0, %v742
  %v744 = vpop.f32.mrb[0].mxu0
  %745 = vmatprep.mubr.f32.mxu0 0.0
  %746 = vmatmul.mubr.f32.gmra.mrb[0].mxu0 %v656
  %v747 = vpop.f32.mrb[0].mxu0
  %v748 = vadd.f32 0.0, %v747
  %v749 = vpop.f32.mrb[0].mxu0
  %750 = vmatprep.mubr.f32.mxu0 0.0
  %751 = vmatmul.mubr.f32.gmra.mrb[0].mxu0 %v659
  %v752 = vpop.f32.mrb[0].mxu0
  %v753 = vadd.f32 0.0, %v752
  %v754 = vpop.f32.mrb[0].mxu0
  %755 = vdwg.mxu0
  %v756 = vadd.f32 %v622, %v728
  %v757 = vadd.f32 %v623, %v733
  %v758 = vadd.f32 %v624, %v738
  %v759 = vadd.f32 %v625, %v743
  %v760 = vadd.f32 %v626, %v748
  %v761 = vadd.f32 %v627, %v753
  %v762 = vrot.slane %v244, 2
  %v763 = vrot.slane %v245, 2
  %v764 = vrot.slane %v246, 2
  %v765 = vrot.slane %v247, 2
  %v766 = vrot.slane %v248, 2
  %v767 = vrot.slane %v249, 2
  %vm768 = vcmp.lt.s32.totalorder %v15, 6
  %v769 = vsel %vm768, %v766, %v767
  %v770 = vsel %vm768, %v765, %v766
  %v771 = vsel %vm768, %v764, %v765
  %v772 = vsel %vm768, %v763, %v764
  %v773 = vsel %vm768, %v762, %v763
  %v774 = vsel %vm768, %v767, %v762
  %v775 = vld [vmem:[%s1 + $0xe0] sm:$0xff]
  %v776 = vld [vmem:[%s1 + $0xe8] sm:$0xff]
  %v778 = vsel %vm280, %v773, 0
  %v781 = vsel %vm280, %v772, 0
  %v784 = vsel %vm280, %v771, 0
  %v787 = vsel %vm280, %v770, 0
  %v790 = vsel %vm280, %v769, 0
  %v793 = vsel %vm280, %v774, 0
  %795 = vmatprep.subr.mxu0 0.0
  %796 = vmatpush1.msra.mxu0 %v775
  %797 = vmatprep.subr.mxu0 0.0
  %798 = vmatpush1.msra.mxu0 %v776
  %799 = vmatprep.subr.mxu0 0.0
  %800 = vmatpush1.msra.mxu0 0.0
  %801 = vmatprep.subr.mxu0 0.0
  %802 = vmatpush1.msra.mxu0 0.0
  %803 = vmatprep.subr.mxu0 0.0
  %804 = vmatpush1.msra.mxu0 0.0
  %805 = vmatprep.subr.mxu0 0.0
  %806 = vmatpush1.msra.mxu0 0.0
  %807 = vmatprep.subr.mxu0 0.0
  %808 = vmatpush1.msra.mxu0 0.0
  %809 = vmatprep.subr.mxu0 0.0
  %810 = vmatpush1.msra.mxu0 0.0
  %811 = vmatprep.subr.mxu0 0.0
  %812 = vmatpush1.msra.mxu0 0.0
  %813 = vmatprep.subr.mxu0 0.0
  %814 = vmatpush1.msra.mxu0 0.0
  %815 = vmatprep.subr.mxu0 0.0
  %816 = vmatpush1.msra.mxu0 0.0
  %817 = vmatprep.subr.mxu0 0.0
  %818 = vmatpush1.msra.mxu0 0.0
  %819 = vmatprep.subr.mxu0 0.0
  %820 = vmatpush1.msra.mxu0 0.0
  %821 = vmatprep.subr.mxu0 0.0
  %822 = vmatpush1.msra.mxu0 0.0
  %823 = vmatprep.subr.mxu0 0.0
  %824 = vmatpush1.msra.mxu0 0.0
  %825 = vmatprep.subr.mxu0 0.0
  %826 = vmatpush1.msra.mxu0 0.0
  %827 = vmatprep.subr.mxu0 0.0
  %828 = vmatpush1.msra.mxu0 0.0
  %829 = vmatprep.subr.mxu0 0.0
  %830 = vmatpush1.msra.mxu0 0.0
  %831 = vmatprep.subr.mxu0 0.0
  %832 = vmatpush1.msra.mxu0 0.0
  %833 = vmatprep.subr.mxu0 0.0
  %834 = vmatpush1.msra.mxu0 0.0
  %835 = vmatprep.subr.mxu0 0.0
  %836 = vmatpush1.msra.mxu0 0.0
  %837 = vmatprep.subr.mxu0 0.0
  %838 = vmatpush1.msra.mxu0 0.0
  %839 = vmatprep.subr.mxu0 0.0
  %840 = vmatpush1.msra.mxu0 0.0
  %841 = vmatprep.subr.mxu0 0.0
  %842 = vmatpush1.msra.mxu0 0.0
  %843 = vmatprep.subr.mxu0 0.0
  %844 = vmatpush1.msra.mxu0 0.0
  %845 = vmatprep.subr.mxu0 0.0
  %846 = vmatpush1.msra.mxu0 0.0
  %847 = vmatprep.subr.mxu0 0.0
  %848 = vmatpush1.msra.mxu0 0.0
  %849 = vmatprep.subr.mxu0 0.0
  %850 = vmatpush1.msra.mxu0 0.0
  %851 = vmatprep.subr.mxu0 0.0
  %852 = vmatpush1.msra.mxu0 0.0
  %853 = vmatprep.subr.mxu0 0.0
  %854 = vmatpush1.msra.mxu0 0.0
  %855 = vmatprep.subr.mxu0 0.0
  %856 = vmatpush1.msra.mxu0 0.0
  %857 = vmatprep.subr.mxu0 0.0
  %858 = vmatpush1.msra.mxu0 0.0
  %859 = vmatprep.mubr.f32.mxu0 0.0
  %860 = vmatmul.mubr.f32.gmra.mrb[0].mxu0 %v778
  %v861 = vpop.f32.mrb[0].mxu0
  %v862 = vadd.f32 0.0, %v861
  %v863 = vpop.f32.mrb[0].mxu0
  %864 = vmatprep.mubr.f32.mxu0 0.0
  %865 = vmatmul.mubr.f32.gmra.mrb[0].mxu0 %v781
  %v866 = vpop.f32.mrb[0].mxu0
  %v867 = vadd.f32 0.0, %v866
  %v868 = vpop.f32.mrb[0].mxu0
  %869 = vmatprep.mubr.f32.mxu0 0.0
  %870 = vmatmul.mubr.f32.gmra.mrb[0].mxu0 %v784
  %v871 = vpop.f32.mrb[0].mxu0
  %v872 = vadd.f32 0.0, %v871
  %v873 = vpop.f32.mrb[0].mxu0
  %874 = vmatprep.mubr.f32.mxu0 0.0
  %875 = vmatmul.mubr.f32.gmra.mrb[0].mxu0 %v787
  %v876 = vpop.f32.mrb[0].mxu0
  %v877 = vadd.f32 0.0, %v876
  %v878 = vpop.f32.mrb[0].mxu0
  %879 = vmatprep.mubr.f32.mxu0 0.0
  %880 = vmatmul.mubr.f32.gmra.mrb[0].mxu0 %v790
  %v881 = vpop.f32.mrb[0].mxu0
  %v882 = vadd.f32 0.0, %v881
  %v883 = vpop.f32.mrb[0].mxu0
  %884 = vmatprep.mubr.f32.mxu0 0.0
  %885 = vmatmul.mubr.f32.gmra.mrb[0].mxu0 %v793
  %v886 = vpop.f32.mrb[0].mxu0
  %v887 = vadd.f32 0.0, %v886
  %v888 = vpop.f32.mrb[0].mxu0
  %889 = vdwg.mxu0
  %v890 = vadd.f32 %v756, %v862
  %v891 = vadd.f32 %v757, %v867
  %v892 = vadd.f32 %v758, %v872
  %v893 = vadd.f32 %v759, %v877
  %v894 = vadd.f32 %v760, %v882
  %v895 = vadd.f32 %v761, %v887
  %v896 = vld [vmem:[%s2 + $0x1] sm:$0x1]
  %v897 = vlaneseq
  %v898 = vshrl.u32 %v897, 7
  %v899 = vsub.s32 0, %v898
  %v900 = vrot.slane %v896, %v899
  %v901 = vadd.f32 %v890, %v900
  %v902 = vadd.f32 %v891, %v900
  %v903 = vadd.f32 %v892, %v900
  %v904 = vadd.f32 %v893, %v900
  %v905 = vadd.f32 %v894, %v900
  %v906 = vadd.f32 %v895, %v900
  %v907 = vmax.f32 %v901, 0.0
  %v908 = vmax.f32 %v902, 0.0
  %v909 = vmax.f32 %v903, 0.0
  %v910 = vmax.f32 %v904, 0.0
  %v911 = vmax.f32 %v905, 0.0
  %v912 = vmax.f32 %v906, 0.0
  %v913 = vld [vmem:[%s1 + $0xf0] sm:$0xff]
  %v914 = vld [vmem:[%s1 + $0xf8] sm:$0xff]
  %v915 = vld [vmem:[%s2 + $0x2] sm:$0x1]
  %v916 = vlaneseq
  %v917 = vshrl.u32 %v916, 7
  %v918 = vsub.s32 0, %v917
  %v919 = vrot.slane %v915, %v918
  %v921 = vsel %vm280, %v907, 0
  %v924 = vsel %vm280, %v908, 0
  %v927 = vsel %vm280, %v909, 0
  %v930 = vsel %vm280, %v910, 0
  %v933 = vsel %vm280, %v911, 0
  %v936 = vsel %vm280, %v912, 0
  %938 = vmatprep.subr.mxu0 0.0
  %939 = vmatpush1.msra.mxu0 %v913
  %940 = vmatprep.subr.mxu0 0.0
  %941 = vmatpush1.msra.mxu0 %v914
  %942 = vmatprep.subr.mxu0 0.0
  %943 = vmatpush1.msra.mxu0 0.0
  %944 = vmatprep.subr.mxu0 0.0
  %945 = vmatpush1.msra.mxu0 0.0
  %946 = vmatprep.subr.mxu0 0.0
  %947 = vmatpush1.msra.mxu0 0.0
  %948 = vmatprep.subr.mxu0 0.0
  %949 = vmatpush1.msra.mxu0 0.0
  %950 = vmatprep.subr.mxu0 0.0
  %951 = vmatpush1.msra.mxu0 0.0
  %952 = vmatprep.subr.mxu0 0.0
  %953 = vmatpush1.msra.mxu0 0.0
  %954 = vmatprep.subr.mxu0 0.0
  %955 = vmatpush1.msra.mxu0 0.0
  %956 = vmatprep.subr.mxu0 0.0
  %957 = vmatpush1.msra.mxu0 0.0
  %958 = vmatprep.subr.mxu0 0.0
  %959 = vmatpush1.msra.mxu0 0.0
  %960 = vmatprep.subr.mxu0 0.0
  %961 = vmatpush1.msra.mxu0 0.0
  %962 = vmatprep.subr.mxu0 0.0
  %963 = vmatpush1.msra.mxu0 0.0
  %964 = vmatprep.subr.mxu0 0.0
  %965 = vmatpush1.msra.mxu0 0.0
  %966 = vmatprep.subr.mxu0 0.0
  %967 = vmatpush1.msra.mxu0 0.0
  %968 = vmatprep.subr.mxu0 0.0
  %969 = vmatpush1.msra.mxu0 0.0
  %970 = vmatprep.subr.mxu0 0.0
  %971 = vmatpush1.msra.mxu0 0.0
  %972 = vmatprep.subr.mxu0 0.0
  %973 = vmatpush1.msra.mxu0 0.0
  %974 = vmatprep.subr.mxu0 0.0
  %975 = vmatpush1.msra.mxu0 0.0
  %976 = vmatprep.subr.mxu0 0.0
  %977 = vmatpush1.msra.mxu0 0.0
  %978 = vmatprep.subr.mxu0 0.0
  %979 = vmatpush1.msra.mxu0 0.0
  %980 = vmatprep.subr.mxu0 0.0
  %981 = vmatpush1.msra.mxu0 0.0
  %982 = vmatprep.subr.mxu0 0.0
  %983 = vmatpush1.msra.mxu0 0.0
  %984 = vmatprep.subr.mxu0 0.0
  %985 = vmatpush1.msra.mxu0 0.0
  %986 = vmatprep.subr.mxu0 0.0
  %987 = vmatpush1.msra.mxu0 0.0
  %988 = vmatprep.subr.mxu0 0.0
  %989 = vmatpush1.msra.mxu0 0.0
  %990 = vmatprep.subr.mxu0 0.0
  %991 = vmatpush1.msra.mxu0 0.0
  %992 = vmatprep.subr.mxu0 0.0
  %993 = vmatpush1.msra.mxu0 0.0
  %994 = vmatprep.subr.mxu0 0.0
  %995 = vmatpush1.msra.mxu0 0.0
  %996 = vmatprep.subr.mxu0 0.0
  %997 = vmatpush1.msra.mxu0 0.0
  %998 = vmatprep.subr.mxu0 0.0
  %999 = vmatpush1.msra.mxu0 0.0
  %1000 = vmatprep.subr.mxu0 0.0
  %1001 = vmatpush1.msra.mxu0 0.0
  %1002 = vmatprep.mubr.f32.mxu0 0.0
  %1003 = vmatmul.mubr.f32.gmra.mrb[0].mxu0 %v921
  %v1004 = vpop.f32.mrb[0].mxu0
  %v1005 = vadd.f32 %v919, %v1004
  %v1006 = vpop.f32.mrb[0].mxu0
  %1007 = vmatprep.mubr.f32.mxu0 0.0
  %1008 = vmatmul.mubr.f32.gmra.mrb[0].mxu0 %v924
  %v1009 = vpop.f32.mrb[0].mxu0
  %v1010 = vadd.f32 %v919, %v1009
  %v1011 = vpop.f32.mrb[0].mxu0
  %1012 = vmatprep.mubr.f32.mxu0 0.0
  %1013 = vmatmul.mubr.f32.gmra.mrb[0].mxu0 %v927
  %v1014 = vpop.f32.mrb[0].mxu0
  %v1015 = vadd.f32 %v919, %v1014
  %v1016 = vpop.f32.mrb[0].mxu0
  %1017 = vmatprep.mubr.f32.mxu0 0.0
  %1018 = vmatmul.mubr.f32.gmra.mrb[0].mxu0 %v930
  %v1019 = vpop.f32.mrb[0].mxu0
  %v1020 = vadd.f32 %v919, %v1019
  %v1021 = vpop.f32.mrb[0].mxu0
  %1022 = vmatprep.mubr.f32.mxu0 0.0
  %1023 = vmatmul.mubr.f32.gmra.mrb[0].mxu0 %v933
  %v1024 = vpop.f32.mrb[0].mxu0
  %v1025 = vadd.f32 %v919, %v1024
  %v1026 = vpop.f32.mrb[0].mxu0
  %1027 = vmatprep.mubr.f32.mxu0 0.0
  %1028 = vmatmul.mubr.f32.gmra.mrb[0].mxu0 %v936
  %v1029 = vpop.f32.mrb[0].mxu0
  %v1030 = vadd.f32 %v919, %v1029
  %v1031 = vpop.f32.mrb[0].mxu0
  %1032 = vdwg.mxu0
  %v1033 = vmax.f32 %v1005, 0.0
  %v1034 = vmax.f32 %v1010, 0.0
  %v1035 = vmax.f32 %v1015, 0.0
  %v1036 = vmax.f32 %v1020, 0.0
  %v1037 = vmax.f32 %v1025, 0.0
  %v1038 = vmax.f32 %v1030, 0.0
  %v1039 = vld [vmem:[%s1 + $0x100] sm:$0xff]
  %v1040 = vld [vmem:[%s1 + $0x108] sm:$0xff]
  %v1041 = vld [vmem:[%s2 + $0x3] sm:$0x1]
  %v1042 = vlaneseq
  %v1043 = vshrl.u32 %v1042, 7
  %v1044 = vsub.s32 0, %v1043
  %v1045 = vrot.slane %v1041, %v1044
  %v1047 = vsel %vm280, %v1033, 0
  %v1050 = vsel %vm280, %v1034, 0
  %v1053 = vsel %vm280, %v1035, 0
  %v1056 = vsel %vm280, %v1036, 0
  %v1059 = vsel %vm280, %v1037, 0
  %v1062 = vsel %vm280, %v1038, 0
  %1064 = vmatprep.subr.mxu0 0.0
  %1065 = vmatpush1.msra.mxu0 %v1039
  %1066 = vmatprep.subr.mxu0 0.0
  %1067 = vmatpush1.msra.mxu0 %v1040
  %1068 = vmatprep.subr.mxu0 0.0
  %1069 = vmatpush1.msra.mxu0 0.0
  %1070 = vmatprep.subr.mxu0 0.0
  %1071 = vmatpush1.msra.mxu0 0.0
  %1072 = vmatprep.subr.mxu0 0.0
  %1073 = vmatpush1.msra.mxu0 0.0
  %1074 = vmatprep.subr.mxu0 0.0
  %1075 = vmatpush1.msra.mxu0 0.0
  %1076 = vmatprep.subr.mxu0 0.0
  %1077 = vmatpush1.msra.mxu0 0.0
  %1078 = vmatprep.subr.mxu0 0.0
  %1079 = vmatpush1.msra.mxu0 0.0
  %1080 = vmatprep.subr.mxu0 0.0
  %1081 = vmatpush1.msra.mxu0 0.0
  %1082 = vmatprep.subr.mxu0 0.0
  %1083 = vmatpush1.msra.mxu0 0.0
  %1084 = vmatprep.subr.mxu0 0.0
  %1085 = vmatpush1.msra.mxu0 0.0
  %1086 = vmatprep.subr.mxu0 0.0
  %1087 = vmatpush1.msra.mxu0 0.0
  %1088 = vmatprep.subr.mxu0 0.0
  %1089 = vmatpush1.msra.mxu0 0.0
  %1090 = vmatprep.subr.mxu0 0.0
  %1091 = vmatpush1.msra.mxu0 0.0
  %1092 = vmatprep.subr.mxu0 0.0
  %1093 = vmatpush1.msra.mxu0 0.0
  %1094 = vmatprep.subr.mxu0 0.0
  %1095 = vmatpush1.msra.mxu0 0.0
  %1096 = vmatprep.subr.mxu0 0.0
  %1097 = vmatpush1.msra.mxu0 0.0
  %1098 = vmatprep.subr.mxu0 0.0
  %1099 = vmatpush1.msra.mxu0 0.0
  %1100 = vmatprep.subr.mxu0 0.0
  %1101 = vmatpush1.msra.mxu0 0.0
  %1102 = vmatprep.subr.mxu0 0.0
  %1103 = vmatpush1.msra.mxu0 0.0
  %1104 = vmatprep.subr.mxu0 0.0
  %1105 = vmatpush1.msra.mxu0 0.0
  %1106 = vmatprep.subr.mxu0 0.0
  %1107 = vmatpush1.msra.mxu0 0.0
  %1108 = vmatprep.subr.mxu0 0.0
  %1109 = vmatpush1.msra.mxu0 0.0
  %1110 = vmatprep.subr.mxu0 0.0
  %1111 = vmatpush1.msra.mxu0 0.0
  %1112 = vmatprep.subr.mxu0 0.0
  %1113 = vmatpush1.msra.mxu0 0.0
  %1114 = vmatprep.subr.mxu0 0.0
  %1115 = vmatpush1.msra.mxu0 0.0
  %1116 = vmatprep.subr.mxu0 0.0
  %1117 = vmatpush1.msra.mxu0 0.0
  %1118 = vmatprep.subr.mxu0 0.0
  %1119 = vmatpush1.msra.mxu0 0.0
  %1120 = vmatprep.subr.mxu0 0.0
  %1121 = vmatpush1.msra.mxu0 0.0
  %1122 = vmatprep.subr.mxu0 0.0
  %1123 = vmatpush1.msra.mxu0 0.0
  %1124 = vmatprep.subr.mxu0 0.0
  %1125 = vmatpush1.msra.mxu0 0.0
  %1126 = vmatprep.subr.mxu0 0.0
  %1127 = vmatpush1.msra.mxu0 0.0
  %1128 = vmatprep.mubr.f32.mxu0 0.0
  %1129 = vmatmul.mubr.f32.gmra.mrb[0].mxu0 %v1047
  %v1130 = vpop.f32.mrb[0].mxu0
  %v1131 = vadd.f32 %v1045, %v1130
  %v1132 = vpop.f32.mrb[0].mxu0
  %1133 = vmatprep.mubr.f32.mxu0 0.0
  %1134 = vmatmul.mubr.f32.gmra.mrb[0].mxu0 %v1050
  %v1135 = vpop.f32.mrb[0].mxu0
  %v1136 = vadd.f32 %v1045, %v1135
  %v1137 = vpop.f32.mrb[0].mxu0
  %1138 = vmatprep.mubr.f32.mxu0 0.0
  %1139 = vmatmul.mubr.f32.gmra.mrb[0].mxu0 %v1053
  %v1140 = vpop.f32.mrb[0].mxu0
  %v1141 = vadd.f32 %v1045, %v1140
  %v1142 = vpop.f32.mrb[0].mxu0
  %1143 = vmatprep.mubr.f32.mxu0 0.0
  %1144 = vmatmul.mubr.f32.gmra.mrb[0].mxu0 %v1056
  %v1145 = vpop.f32.mrb[0].mxu0
  %v1146 = vadd.f32 %v1045, %v1145
  %v1147 = vpop.f32.mrb[0].mxu0
  %1148 = vmatprep.mubr.f32.mxu0 0.0
  %1149 = vmatmul.mubr.f32.gmra.mrb[0].mxu0 %v1059
  %v1150 = vpop.f32.mrb[0].mxu0
  %v1151 = vadd.f32 %v1045, %v1150
  %v1152 = vpop.f32.mrb[0].mxu0
  %1153 = vmatprep.mubr.f32.mxu0 0.0
  %1154 = vmatmul.mubr.f32.gmra.mrb[0].mxu0 %v1062
  %v1155 = vpop.f32.mrb[0].mxu0
  %v1156 = vadd.f32 %v1045, %v1155
  %v1157 = vpop.f32.mrb[0].mxu0
  %1158 = vdwg.mxu0
  %1159 = vst.msk [vmem:[%s3] sm:$0xff] %vm280, %v1131
  %1160 = vst.msk [vmem:[%s3 + $0x8] sm:$0xff] %vm280, %v1136
  %1161 = vst.msk [vmem:[%s3 + $0x10] sm:$0xff] %vm280, %v1141
  %1162 = vst.msk [vmem:[%s3 + $0x18] sm:$0xff] %vm280, %v1146
  %1163 = vst.msk [vmem:[%s3 + $0x20] sm:$0xff] %vm280, %v1151
  %1164 = vst.msk [vmem:[%s3 + $0x28] sm:$0xff] %vm280, %v1156
  // Predicated region
  $region14: #{tpu_custom_call.1} parent=0 // pred_check
    _
  $region15: #{tpu_custom_call.1} parent=0 // pred_check_branch
    %1166 = sbr.rel (0) target = $region17
  $region16: #{tpu_custom_call.1} parent=0 // pred_region
    _
  $region17: #{tpu_custom_call.1} parent=0 // pred_fallthru
    _
  // Predicated region
  $region18: #{tpu_custom_call.1} parent=0 // pred_check
    _
  $region19: #{tpu_custom_call.1} parent=0 // pred_check_branch
    %1168 = sbr.rel (0) target = $region21
  $region20: #{tpu_custom_call.1} parent=0 // pred_region
    _
  $region21: #{tpu_custom_call.1} parent=0 // pred_fallthru
    _

</llo_original>
